<compile_context>
chip_gen: v7x
topology: tpu7x:2x2x1
jax: 0.10.0
libtpu: 0.0.40
codegen_flags: <defaults>
</compile_context>

<pallas_src>
import jax
import jax.numpy as jnp
from jax.experimental import pallas as pl
from jax.experimental.pallas import tpu as pltpu

NUM_STRATEGIES = 9          # len(StrategyType)
_COMPUTE_DTYPE = jnp.bfloat16
_OUT_DTYPE = jnp.bfloat16   # packed output slab dtype (halves output HBM traffic)

_H_PAD = 128                # every feature-extractor activation padded to 128 lanes
_HEAD_PAD = 256             # fused head hidden width: 32+32+32+64 = 160 -> 256
_OUT_PAD = 128              # packed output lanes: 9+1+1+10 = 21 -> 128


def _round_up(n, m):
    return (n + m - 1) // m * m


def _choose_tiling(batch):
    """Pick (tile_b, b_pad).  tile_b <= 512, multiple of 16 (except tiny
    batches, where the block equals the full batch dim), >=2 grid steps for
    batch > 16 (v7x megacore), minimal last-tile padding waste."""
    if batch <= 16:
        return batch, batch                      # single full-array block
    n_tiles = max(2, -(-batch // 512))
    tile_b = min(512, _round_up(-(-batch // n_tiles), 16))
    b_pad = _round_up(batch, tile_b)
    return tile_b, b_pad


# -----------------------------------------------------------------------------
# Kernel
# -----------------------------------------------------------------------------
def _vault_kernel(x_ref,
                  w1_ref, b123_ref, w23_ref,     # feature extractor (BN folded fwd)
                  wh1_ref, bh1_ref, wh2_ref, bh2_ref,  # fused 4-head layers
                  out_ref):
    f32 = jnp.float32
    bf16 = _COMPUTE_DTYPE

    # --- layer 1: f32 matmul with K = input_dim (tiny; avoids any input pad) --
    h = jnp.dot(x_ref[...], w1_ref[...], preferred_element_type=f32) + b123_ref[0]
    h = jnp.maximum(h, 0.0)                                          # (TB, 128)

    # --- layers 2, 3 (eval-BN folded into these weights) ----------------------
    h = jnp.maximum(jnp.dot(h.astype(bf16), w23_ref[0],
                            preferred_element_type=f32) + b123_ref[1], 0.0)
    h = jnp.maximum(jnp.dot(h.astype(bf16), w23_ref[1],
                            preferred_element_type=f32) + b123_ref[2], 0.0)

    # --- fused head layer 1: one (128, 256) matmul for all four heads ---------
    g = jnp.maximum(jnp.dot(h.astype(bf16), wh1_ref[...],
                            preferred_element_type=f32) + bh1_ref[...], 0.0)

    # --- fused head layer 2: block-diagonal (256, 128) -> packed logits -------
    z = jnp.dot(g.astype(bf16), wh2_ref[...],
                preferred_element_type=f32) + bh2_ref[...]           # (TB, 128)

    # Packed layout: [0:9) strategy, 9 apr, 10 risk(pre-sigmoid), [11:21) alloc.
    col = jax.lax.broadcasted_iota(jnp.int32, z.shape, 1)
    alloc_mask = (col >= 11) & (col < 21)
    risk_mask = col == 10
    neg_big = jnp.float32(-1e30)

    # Single full-width exp shared by the sigmoid (lane 10) and the softmax
    # numerators (alloc lanes); other lanes get exp(-1e30) == 0.
    m = jnp.max(jnp.where(alloc_mask, z, neg_big), axis=-1, keepdims=True)
    arg = jnp.where(alloc_mask, z - m, jnp.where(risk_mask, -z, neg_big))
    e = jnp.exp(arg)

    sig = 1.0 / (1.0 + e)                        # valid on lane 10 (e = exp(-z))
    num = jnp.where(alloc_mask, e, 0.0)          # select (not multiply) -> no inf*0
    denom = jnp.sum(num, axis=-1, keepdims=True)
    alloc = num / denom                          # exact divide (f32)

    out = jnp.where(col < 10, z, 0.0)            # strategy logits + apr (identity)
    out = jnp.where(risk_mask, sig, out)         # risk
    out = jnp.where(alloc_mask, alloc, out)      # allocation
    out_ref[...] = out.astype(out_ref.dtype)     # single unmasked 128-wide bf16 store


# -----------------------------------------------------------------------------
# Parameter construction (PyTorch-style init + BN fold + padding/packing)
# -----------------------------------------------------------------------------
def _init_linear(key, fan_in, fan_out):
    """PyTorch nn.Linear default init; stored as (in, out) / (out,)."""
    kw, kb = jax.random.split(key)
    bound = 1.0 / jnp.sqrt(jnp.float32(fan_in))
    w = jax.random.uniform(kw, (fan_in, fan_out), jnp.float32, -bound, bound)
    b = jax.random.uniform(kb, (fan_out,), jnp.float32, -bound, bound)
    return w, b


def init_params(key, input_dim=50, hidden_dims=(128, 64, 32)):
    assert len(hidden_dims) == 3 and max(hidden_dims) <= _H_PAD
    keys = jax.random.split(key, 11)
    eps = 1e-5

    # raw PyTorch-equivalent linears
    w1, b1 = _init_linear(keys[0], input_dim, hidden_dims[0])
    w2, b2 = _init_linear(keys[1], hidden_dims[0], hidden_dims[1])
    w3, b3 = _init_linear(keys[2], hidden_dims[1], hidden_dims[2])
    feat = hidden_dims[2]
    wc1, bc1 = _init_linear(keys[3], feat, 32)
    wc2, bc2 = _init_linear(keys[4], 32, NUM_STRATEGIES)
    wa1, ba1 = _init_linear(keys[5], feat, 32)
    wa2, ba2 = _init_linear(keys[6], 32, 1)
    wr1, br1 = _init_linear(keys[7], feat, 32)
    wr2, br2 = _init_linear(keys[8], 32, 1)
    wl1, bl1 = _init_linear(keys[9], feat, 64)
    wl2, bl2 = _init_linear(keys[10], 64, 10)

    # eval-mode BatchNorm1d with default running stats -> per-feature (scale, shift)
    def bn_scale_shift(dim):
        gamma = jnp.ones((dim,), jnp.float32)
        beta = jnp.zeros((dim,), jnp.float32)
        mean = jnp.zeros((dim,), jnp.float32)
        var = jnp.ones((dim,), jnp.float32)
        s = gamma / jnp.sqrt(var + eps)
        t = beta - mean * s
        return s, t

    s1, t1 = bn_scale_shift(hidden_dims[0])
    s2, t2 = bn_scale_shift(hidden_dims[1])
    s3, t3 = bn_scale_shift(hidden_dims[2])

    # Fold BN_i (applied after ReLU of layer i) into the NEXT Linear (exact):
    #   Lin(s*h + t) = h @ (diag(s) @ W) + (t @ W + b)
    def fold_into(s, t, w, b):
        return s[:, None] * w, b + t @ w

    w2f, b2f = fold_into(s1, t1, w2, b2)
    w3f, b3f = fold_into(s2, t2, w3, b3)
    wc1f, bc1f = fold_into(s3, t3, wc1, bc1)
    wa1f, ba1f = fold_into(s3, t3, wa1, ba1)
    wr1f, br1f = fold_into(s3, t3, wr1, br1)
    wl1f, bl1f = fold_into(s3, t3, wl1, bl1)

    # pad helpers (zero padding keeps the math exact)
    def pad2(w, rows, cols):
        return jnp.zeros((rows, cols), jnp.float32).at[:w.shape[0], :w.shape[1]].set(w)

    def pad1(b, cols):
        return jnp.zeros((1, cols), jnp.float32).at[0, :b.shape[0]].set(b)

    # layer 1: K = input_dim rows (no input padding needed), f32 for K=50 matmul
    W1 = pad2(w1, input_dim, _H_PAD)                                  # (in, 128) f32

    # layers 2/3 stacked into one operand; biases 1/2/3 stacked into one operand
    W23 = jnp.stack([pad2(w2f, _H_PAD, _H_PAD), pad2(w3f, _H_PAD, _H_PAD)])
    B123 = jnp.stack([pad1(b1, _H_PAD), pad1(b2f, _H_PAD), pad1(b3f, _H_PAD)])

    # fused head layer 1: cols [0:32) classifier, [32:64) apr, [64:96) risk, [96:160) alloc
    wh1 = jnp.concatenate([wc1f, wa1f, wr1f, wl1f], axis=1)           # (32, 160)
    bh1 = jnp.concatenate([bc1f, ba1f, br1f, bl1f], axis=0)           # (160,)
    WH1, BH1 = pad2(wh1, _H_PAD, _HEAD_PAD), pad1(bh1, _HEAD_PAD)

    # fused head layer 2: block-diagonal -> packed output columns
    WH2 = jnp.zeros((_HEAD_PAD, _OUT_PAD), jnp.float32)
    WH2 = WH2.at[0:32, 0:NUM_STRATEGIES].set(wc2)
    WH2 = WH2.at[32:64, 9:10].set(wa2)
    WH2 = WH2.at[64:96, 10:11].set(wr2)
    WH2 = WH2.at[96:160, 11:21].set(wl2)
    BH2 = jnp.zeros((1, _OUT_PAD), jnp.float32)
    BH2 = BH2.at[0, 0:NUM_STRATEGIES].set(bc2)
    BH2 = BH2.at[0, 9].set(ba2[0]).at[0, 10].set(br2[0])
    BH2 = BH2.at[0, 11:21].set(bl2)

    dt = _COMPUTE_DTYPE  # bf16 weights for layers >=2 (f32 accumulation in-kernel)
    return (W1,                      # f32 (layer-1 K=50 matmul stays f32)
            B123,                    # f32 biases (added in f32)
            W23.astype(dt),
            WH1.astype(dt), BH1,
            WH2.astype(dt), BH2)


# -----------------------------------------------------------------------------
# Wrapper
# -----------------------------------------------------------------------------
@jax.jit
def vault_strategy_forward(x, params):
    W1, B123, W23, WH1, BH1, WH2, BH2 = params
    batch, in_dim = x.shape

    tile_b, b_pad = _choose_tiling(batch)
    grid = b_pad // tile_b

    in_specs = [
        pl.BlockSpec((tile_b, in_dim), lambda i: (i, 0)),   # raw f32 input, no pre-pad
        # weights/biases: full-array blocks, constant index maps -> VMEM-resident
        pl.BlockSpec(W1.shape, lambda i: (0, 0)),
        pl.BlockSpec(B123.shape, lambda i: (0, 0, 0)),
        pl.BlockSpec(W23.shape, lambda i: (0, 0, 0)),
        pl.BlockSpec(WH1.shape, lambda i: (0, 0)),
        pl.BlockSpec(BH1.shape, lambda i: (0, 0)),
        pl.BlockSpec(WH2.shape, lambda i: (0, 0)),
        pl.BlockSpec(BH2.shape, lambda i: (0, 0)),
    ]
    out_spec = pl.BlockSpec((tile_b, _OUT_PAD), lambda i: (i, 0))

    packed = pl.pallas_call(
        _vault_kernel,
        out_shape=jax.ShapeDtypeStruct((b_pad, _OUT_PAD), _OUT_DTYPE),
        grid=(grid,),
        in_specs=in_specs,
        out_specs=out_spec,
        compiler_params=pltpu.CompilerParams(
            dimension_semantics=("parallel",),
        ),
    )(x.astype(jnp.float32), W1, B123, W23, WH1, BH1, WH2, BH2)

    packed = packed[:batch]
    f32 = jnp.float32
    return {
        "strategy_logits": packed[:, 0:NUM_STRATEGIES].astype(f32),
        "apr_prediction": packed[:, 9:10].astype(f32),
        "risk_prediction": packed[:, 10:11].astype(f32),
        "allocation_prediction": packed[:, 11:21].astype(f32),
    }


if __name__ == "__main__":
    key = jax.random.PRNGKey(0)
    k_x, k_p = jax.random.split(key)

    batch, input_dim = 8, 50
    x = jax.random.normal(k_x, (batch, input_dim), jnp.float32)
    params = init_params(k_p, input_dim=input_dim, hidden_dims=(128, 64, 32))

    out = vault_strategy_forward(x, params)
    jax.block_until_ready(out)

    assert out["strategy_logits"].shape == (batch, NUM_STRATEGIES)
    assert out["apr_prediction"].shape == (batch, 1)
    assert out["risk_prediction"].shape == (batch, 1)
    assert out["allocation_prediction"].shape == (batch, 10)
    # sanity: softmax rows sum to ~1 (bf16-stored), sigmoid strictly in (0, 1)
    assert jnp.allclose(out["allocation_prediction"].sum(axis=1), 1.0, atol=2e-2)
    assert bool(jnp.all((out["risk_prediction"] > 0.0) & (out["risk_prediction"] < 1.0)))

    print("KERNEL_OK")
</pallas_src>

<mosaic_0001>
module attributes {stable_mosaic.version = 11 : i64} {
  func.func @_vault_kernel(%arg0: i32, %arg1: memref<8x50xf32, #tpu.memory_space<vmem>>, %arg2: memref<50x128xf32, #tpu.memory_space<vmem>>, %arg3: memref<3x1x128xf32, #tpu.memory_space<vmem>>, %arg4: memref<2x128x128xbf16, #tpu.memory_space<vmem>>, %arg5: memref<128x256xbf16, #tpu.memory_space<vmem>>, %arg6: memref<1x256xf32, #tpu.memory_space<vmem>>, %arg7: memref<256x128xbf16, #tpu.memory_space<vmem>>, %arg8: memref<1x128xf32, #tpu.memory_space<vmem>>, %arg9: memref<8x128xbf16, #tpu.memory_space<vmem>>) attributes {dimension_semantics = [#tpu.dimension_semantics<parallel>], iteration_bounds = array<i64: 1>, scalar_prefetch = 0 : i64, scratch_operands = 0 : i64, tpu.core_type = #tpu.core_type<tc>, window_params = [{transform_indices = @transform_0, window_bounds = array<i64: 8, 50>}, {pipeline_mode = #tpu.pipeline_mode<synchronous>, transform_indices = @transform_1, window_bounds = array<i64: 50, 128>}, {pipeline_mode = #tpu.pipeline_mode<synchronous>, transform_indices = @transform_2, window_bounds = array<i64: 3, 1, 128>}, {pipeline_mode = #tpu.pipeline_mode<synchronous>, transform_indices = @transform_3, window_bounds = array<i64: 2, 128, 128>}, {pipeline_mode = #tpu.pipeline_mode<synchronous>, transform_indices = @transform_4, window_bounds = array<i64: 128, 256>}, {pipeline_mode = #tpu.pipeline_mode<synchronous>, transform_indices = @transform_5, window_bounds = array<i64: 1, 256>}, {pipeline_mode = #tpu.pipeline_mode<synchronous>, transform_indices = @transform_6, window_bounds = array<i64: 256, 128>}, {pipeline_mode = #tpu.pipeline_mode<synchronous>, transform_indices = @transform_7, window_bounds = array<i64: 1, 128>}, {transform_indices = @transform_8, window_bounds = array<i64: 8, 128>}]} {
    %c0 = arith.constant 0 : index
    %c0_0 = arith.constant 0 : index
    %0 = vector.load %arg1[%c0, %c0_0] : memref<8x50xf32, #tpu.memory_space<vmem>>, vector<8x50xf32>
    %c0_1 = arith.constant 0 : index
    %c0_2 = arith.constant 0 : index
    %1 = vector.load %arg2[%c0_1, %c0_2] : memref<50x128xf32, #tpu.memory_space<vmem>>, vector<50x128xf32>
    %cst = arith.constant dense<0.000000e+00> : vector<8x128xf32>
    %2 = tpu.matmul %0, %1, %cst {dimension_numbers = #tpu.dot_dimension_numbers<[1], [0], [0], [1], [0, 0, 1, 1], [], []>} : vector<8x50xf32>, vector<50x128xf32>, vector<8x128xf32> -> vector<8x128xf32>
    %c0_3 = arith.constant 0 : index
    %c0_4 = arith.constant 0 : index
    %c0_5 = arith.constant 0 : index
    %3 = vector.load %arg3[%c0_3, %c0_4, %c0_5] : memref<3x1x128xf32, #tpu.memory_space<vmem>>, vector<1x1x128xf32>
    %4 = vector.shape_cast %3 : vector<1x1x128xf32> to vector<1x128xf32>
    %5 = vector.broadcast %4 : vector<1x128xf32> to vector<8x128xf32>
    %6 = arith.addf %2, %5 : vector<8x128xf32>
    %cst_6 = arith.constant 0.000000e+00 : f32
    %7 = vector.broadcast %cst_6 : f32 to vector<8x128xf32>
    %8 = arith.maximumf %6, %7 : vector<8x128xf32>
    %9 = arith.truncf %8 : vector<8x128xf32> to vector<8x128xbf16>
    %c0_7 = arith.constant 0 : index
    %c0_8 = arith.constant 0 : index
    %c0_9 = arith.constant 0 : index
    %10 = vector.load %arg4[%c0_7, %c0_8, %c0_9] : memref<2x128x128xbf16, #tpu.memory_space<vmem>>, vector<1x128x128xbf16>
    %11 = vector.shape_cast %10 : vector<1x128x128xbf16> to vector<128x128xbf16>
    %cst_10 = arith.constant dense<0.000000e+00> : vector<8x128xf32>
    %12 = tpu.matmul %9, %11, %cst_10 {dimension_numbers = #tpu.dot_dimension_numbers<[1], [0], [0], [1], [0, 0, 1, 1], [], []>} : vector<8x128xbf16>, vector<128x128xbf16>, vector<8x128xf32> -> vector<8x128xf32>
    %c1 = arith.constant 1 : index
    %c0_11 = arith.constant 0 : index
    %c0_12 = arith.constant 0 : index
    %13 = vector.load %arg3[%c1, %c0_11, %c0_12] : memref<3x1x128xf32, #tpu.memory_space<vmem>>, vector<1x1x128xf32>
    %14 = vector.shape_cast %13 : vector<1x1x128xf32> to vector<1x128xf32>
    %15 = vector.broadcast %14 : vector<1x128xf32> to vector<8x128xf32>
    %16 = arith.addf %12, %15 : vector<8x128xf32>
    %cst_13 = arith.constant 0.000000e+00 : f32
    %17 = vector.broadcast %cst_13 : f32 to vector<8x128xf32>
    %18 = arith.maximumf %16, %17 : vector<8x128xf32>
    %19 = arith.truncf %18 : vector<8x128xf32> to vector<8x128xbf16>
    %c1_14 = arith.constant 1 : index
    %c0_15 = arith.constant 0 : index
    %c0_16 = arith.constant 0 : index
    %20 = vector.load %arg4[%c1_14, %c0_15, %c0_16] : memref<2x128x128xbf16, #tpu.memory_space<vmem>>, vector<1x128x128xbf16>
    %21 = vector.shape_cast %20 : vector<1x128x128xbf16> to vector<128x128xbf16>
    %cst_17 = arith.constant dense<0.000000e+00> : vector<8x128xf32>
    %22 = tpu.matmul %19, %21, %cst_17 {dimension_numbers = #tpu.dot_dimension_numbers<[1], [0], [0], [1], [0, 0, 1, 1], [], []>} : vector<8x128xbf16>, vector<128x128xbf16>, vector<8x128xf32> -> vector<8x128xf32>
    %c2 = arith.constant 2 : index
    %c0_18 = arith.constant 0 : index
    %c0_19 = arith.constant 0 : index
    %23 = vector.load %arg3[%c2, %c0_18, %c0_19] : memref<3x1x128xf32, #tpu.memory_space<vmem>>, vector<1x1x128xf32>
    %24 = vector.shape_cast %23 : vector<1x1x128xf32> to vector<1x128xf32>
    %25 = vector.broadcast %24 : vector<1x128xf32> to vector<8x128xf32>
    %26 = arith.addf %22, %25 : vector<8x128xf32>
    %cst_20 = arith.constant 0.000000e+00 : f32
    %27 = vector.broadcast %cst_20 : f32 to vector<8x128xf32>
    %28 = arith.maximumf %26, %27 : vector<8x128xf32>
    %29 = arith.truncf %28 : vector<8x128xf32> to vector<8x128xbf16>
    %c0_21 = arith.constant 0 : index
    %c0_22 = arith.constant 0 : index
    %30 = vector.load %arg5[%c0_21, %c0_22] : memref<128x256xbf16, #tpu.memory_space<vmem>>, vector<128x256xbf16>
    %cst_23 = arith.constant dense<0.000000e+00> : vector<8x256xf32>
    %31 = tpu.matmul %29, %30, %cst_23 {dimension_numbers = #tpu.dot_dimension_numbers<[1], [0], [0], [1], [0, 0, 1, 1], [], []>} : vector<8x128xbf16>, vector<128x256xbf16>, vector<8x256xf32> -> vector<8x256xf32>
    %c0_24 = arith.constant 0 : index
    %c0_25 = arith.constant 0 : index
    %32 = vector.load %arg6[%c0_24, %c0_25] : memref<1x256xf32, #tpu.memory_space<vmem>>, vector<1x256xf32>
    %33 = vector.broadcast %32 : vector<1x256xf32> to vector<8x256xf32>
    %34 = arith.addf %31, %33 : vector<8x256xf32>
    %cst_26 = arith.constant 0.000000e+00 : f32
    %35 = vector.broadcast %cst_26 : f32 to vector<8x256xf32>
    %36 = arith.maximumf %34, %35 : vector<8x256xf32>
    %37 = arith.truncf %36 : vector<8x256xf32> to vector<8x256xbf16>
    %c0_27 = arith.constant 0 : index
    %c0_28 = arith.constant 0 : index
    %38 = vector.load %arg7[%c0_27, %c0_28] : memref<256x128xbf16, #tpu.memory_space<vmem>>, vector<256x128xbf16>
    %cst_29 = arith.constant dense<0.000000e+00> : vector<8x128xf32>
    %39 = tpu.matmul %37, %38, %cst_29 {dimension_numbers = #tpu.dot_dimension_numbers<[1], [0], [0], [1], [0, 0, 1, 1], [], []>} : vector<8x256xbf16>, vector<256x128xbf16>, vector<8x128xf32> -> vector<8x128xf32>
    %c0_30 = arith.constant 0 : index
    %c0_31 = arith.constant 0 : index
    %40 = vector.load %arg8[%c0_30, %c0_31] : memref<1x128xf32, #tpu.memory_space<vmem>>, vector<1x128xf32>
    %41 = vector.broadcast %40 : vector<1x128xf32> to vector<8x128xf32>
    %42 = arith.addf %39, %41 : vector<8x128xf32>
    %43 = tpu.iota {dimensions = array<i32: 1>} : vector<8x128xi32>
    %c11_i32 = arith.constant 11 : i32
    %44 = vector.broadcast %c11_i32 : i32 to vector<8x128xi32>
    %45 = arith.cmpi sge, %43, %44 : vector<8x128xi32>
    %c21_i32 = arith.constant 21 : i32
    %46 = vector.broadcast %c21_i32 : i32 to vector<8x128xi32>
    %47 = arith.cmpi slt, %43, %46 : vector<8x128xi32>
    %48 = arith.andi %45, %47 : vector<8x128xi1>
    %c10_i32 = arith.constant 10 : i32
    %49 = vector.broadcast %c10_i32 : i32 to vector<8x128xi32>
    %50 = arith.cmpi eq, %43, %49 : vector<8x128xi32>
    %cst_32 = arith.constant -1.000000e+30 : f32
    %51 = vector.broadcast %cst_32 : f32 to vector<8x128xf32>
    %52 = arith.select %48, %42, %51 : vector<8x128xi1>, vector<8x128xf32>
    %cst_33 = arith.constant dense<0xFF800000> : vector<8xf32>
    %53 = vector.multi_reduction <maximumf>, %52, %cst_33 [1] : vector<8x128xf32> to vector<8xf32>
    %54 = vector.shape_cast %53 : vector<8xf32> to vector<8x1xf32>
    %55 = vector.broadcast %54 : vector<8x1xf32> to vector<8x128xf32>
    %56 = arith.subf %42, %55 : vector<8x128xf32>
    %cst_34 = arith.constant 0.000000e+00 : f32
    %57 = vector.broadcast %cst_34 : f32 to vector<8x128xf32>
    %58 = arith.subf %57, %42 : vector<8x128xf32>
    %cst_35 = arith.constant -1.000000e+30 : f32
    %59 = vector.broadcast %cst_35 : f32 to vector<8x128xf32>
    %60 = arith.select %50, %58, %59 : vector<8x128xi1>, vector<8x128xf32>
    %61 = arith.select %48, %56, %60 : vector<8x128xi1>, vector<8x128xf32>
    %62 = math.exp %61 : vector<8x128xf32>
    %cst_36 = arith.constant 1.000000e+00 : f32
    %63 = vector.broadcast %cst_36 : f32 to vector<8x128xf32>
    %64 = arith.addf %63, %62 : vector<8x128xf32>
    %cst_37 = arith.constant 1.000000e+00 : f32
    %65 = vector.broadcast %cst_37 : f32 to vector<8x128xf32>
    %66 = arith.divf %65, %64 : vector<8x128xf32>
    %cst_38 = arith.constant 0.000000e+00 : f32
    %67 = vector.broadcast %cst_38 : f32 to vector<8x128xf32>
    %68 = arith.select %48, %62, %67 : vector<8x128xi1>, vector<8x128xf32>
    %cst_39 = arith.constant dense<0.000000e+00> : vector<8xf32>
    %69 = vector.multi_reduction <add>, %68, %cst_39 [1] : vector<8x128xf32> to vector<8xf32>
    %70 = vector.shape_cast %69 : vector<8xf32> to vector<8x1xf32>
    %71 = vector.broadcast %70 : vector<8x1xf32> to vector<8x128xf32>
    %72 = arith.divf %68, %71 : vector<8x128xf32>
    %c10_i32_40 = arith.constant 10 : i32
    %73 = vector.broadcast %c10_i32_40 : i32 to vector<8x128xi32>
    %74 = arith.cmpi slt, %43, %73 : vector<8x128xi32>
    %cst_41 = arith.constant 0.000000e+00 : f32
    %75 = vector.broadcast %cst_41 : f32 to vector<8x128xf32>
    %76 = arith.select %74, %42, %75 : vector<8x128xi1>, vector<8x128xf32>
    %77 = arith.select %50, %66, %76 : vector<8x128xi1>, vector<8x128xf32>
    %78 = arith.select %48, %72, %77 : vector<8x128xi1>, vector<8x128xf32>
    %79 = arith.truncf %78 : vector<8x128xf32> to vector<8x128xbf16>
    %c0_42 = arith.constant 0 : index
    %c0_43 = arith.constant 0 : index
    %80 = vector.load %arg9[%c0_42, %c0_43] : memref<8x128xbf16, #tpu.memory_space<vmem>>, vector<8x128xbf16>
    tpu.vector_store %arg9[%c0_42, %c0_43], %79 {strides = array<i32>} : memref<8x128xbf16, #tpu.memory_space<vmem>>, vector<8x128xbf16>,
    return
  }
  func.func @transform_0(%arg0: i32) -> (i32, i32) {
    %c0_i32 = arith.constant 0 : i32
    %c0_i32_0 = arith.constant 0 : i32
    return %arg0, %c0_i32 : i32, i32
  }
  func.func @transform_1(%arg0: i32) -> (i32, i32) {
    %c0_i32 = arith.constant 0 : i32
    %c0_i32_0 = arith.constant 0 : i32
    %c0_i32_1 = arith.constant 0 : i32
    return %c0_i32, %c0_i32_0 : i32, i32
  }
  func.func @transform_2(%arg0: i32) -> (i32, i32, i32) {
    %c0_i32 = arith.constant 0 : i32
    %c0_i32_0 = arith.constant 0 : i32
    %c0_i32_1 = arith.constant 0 : i32
    %c0_i32_2 = arith.constant 0 : i32
    return %c0_i32, %c0_i32_0, %c0_i32_1 : i32, i32, i32
  }
  func.func @transform_3(%arg0: i32) -> (i32, i32, i32) {
    %c0_i32 = arith.constant 0 : i32
    %c0_i32_0 = arith.constant 0 : i32
    %c0_i32_1 = arith.constant 0 : i32
    %c0_i32_2 = arith.constant 0 : i32
    return %c0_i32, %c0_i32_0, %c0_i32_1 : i32, i32, i32
  }
  func.func @transform_4(%arg0: i32) -> (i32, i32) {
    %c0_i32 = arith.constant 0 : i32
    %c0_i32_0 = arith.constant 0 : i32
    %c0_i32_1 = arith.constant 0 : i32
    return %c0_i32, %c0_i32_0 : i32, i32
  }
  func.func @transform_5(%arg0: i32) -> (i32, i32) {
    %c0_i32 = arith.constant 0 : i32
    %c0_i32_0 = arith.constant 0 : i32
    %c0_i32_1 = arith.constant 0 : i32
    return %c0_i32, %c0_i32_0 : i32, i32
  }
  func.func @transform_6(%arg0: i32) -> (i32, i32) {
    %c0_i32 = arith.constant 0 : i32
    %c0_i32_0 = arith.constant 0 : i32
    %c0_i32_1 = arith.constant 0 : i32
    return %c0_i32, %c0_i32_0 : i32, i32
  }
  func.func @transform_7(%arg0: i32) -> (i32, i32) {
    %c0_i32 = arith.constant 0 : i32
    %c0_i32_0 = arith.constant 0 : i32
    %c0_i32_1 = arith.constant 0 : i32
    return %c0_i32, %c0_i32_0 : i32, i32
  }
  func.func @transform_8(%arg0: i32) -> (i32, i32) {
    %c0_i32 = arith.constant 0 : i32
    %c0_i32_0 = arith.constant 0 : i32
    return %arg0, %c0_i32 : i32, i32
  }
}

</mosaic_0001>

<llo_original>
// kernel: vault_strategy_forward.1
$region0: #{vault_strategy_forward.1}
  #allocation0 [shape = 'u32[]', space=smem, size = 0x4, offset = 0x4, fixed_abs, tag = 'smem constant byte address 0x4 - core index']
  #allocation1 [shape = 'u32[144,128]{1,0:T(1,128)}', space=vmem, size = 0x12000, scoped, tag = 'internal scratch']
  %s0 = inlined_call_operand.hbm [shape: f32[8,50], index: 0, kind: input, shape index: {}]
  %s1 = inlined_call_operand.hbm [shape: f32[50,128], index: 1, kind: input, shape index: {}]
  %s2 = inlined_call_operand.vmem [shape: f32[3,1,128], index: 2, kind: input, shape index: {}]
  %s3 = inlined_call_operand.hbm [shape: bf16[2,128,128], index: 3, kind: input, shape index: {}]
  %s4 = inlined_call_operand.hbm [shape: bf16[128,256], index: 4, kind: input, shape index: {}]
  %s5 = inlined_call_operand.vmem [shape: f32[1,256], index: 5, kind: input, shape index: {}]
  %s6 = inlined_call_operand.hbm [shape: bf16[256,128], index: 6, kind: input, shape index: {}]
  %s7 = inlined_call_operand.vmem [shape: f32[1,128], index: 7, kind: input, shape index: {}]
  %s8 = inlined_call_operand.vmem [shape: bf16[8,128], index: 8, kind: output, shape index: {}]
  %s9 = sld [smem:[#allocation0]]
  $region62: #{vault_strategy_forward.1} parent=0
    _
  %s11 = ssub.s32 1, %s9
  %s12 = scalar_select 0, %s11, %s9
  $region1: #{vault_strategy_forward.1} parent=0
    #allocation2 [shape = 'u8[4096]{0}', space=vmem, size = 0x1000, scoped, tag = 'input window, operand 0, single buffered']
    #allocation3 [shape = 's32[1]{0}', space=sflag, size = 0x4, scoped, tag = 'scoped memory for vault_strategy_forward.1']
    #allocation4 [shape = 'u8[28672]{0}', space=vmem, size = 0x7000, scoped, tag = 'input window, operand 1, single buffered']
    #allocation5 [shape = 's32[1]{0}', space=sflag, size = 0x4, scoped, tag = 'scoped memory for vault_strategy_forward.1']
    #allocation6 [shape = 'u8[65536]{0}', space=vmem, size = 0x10000, scoped, tag = 'input window, operand 3, single buffered']
    #allocation7 [shape = 'u8[65536]{0}', space=vmem, size = 0x10000, scoped, tag = 'input window, operand 4, single buffered']
    #allocation8 [shape = 's32[1]{0}', space=sflag, size = 0x4, scoped, tag = 'scoped memory for vault_strategy_forward.1']
    #allocation9 [shape = 'u8[65536]{0}', space=vmem, size = 0x10000, scoped, tag = 'input window, operand 6, single buffered']
    %13 = vsyncpa [#allocation3], 0
    %14 = vsyncpa [#allocation5], 0
    %15 = vsyncpa [#allocation8], 0
    // Predicated region
    $region2: #{vault_strategy_forward.1} parent=1 // pred_check
      _
    $region3: #{vault_strategy_forward.1} parent=1 // pred_check_branch
      %17 = sbr.rel (0) target = $region5
    $region4: #{vault_strategy_forward.1} parent=1 // pred_region
      %s19 = ssub.s32 128, 128
      %20 = vsyncadd [#allocation3], %s19
      %s22 = sshll.u32 [#allocation2], 4
      %s23 = int_to_ptr.vmem [resolvable:$true] %s22
      %25 = dma.hbm_to_vmem [thread:$0]  %s0, 128, %s23, [#allocation3]
    $region5: #{vault_strategy_forward.1} parent=1 // pred_fallthru
      _
    // Predicated region
    $region6: #{vault_strategy_forward.1} parent=1 // pred_check
      _
    $region7: #{vault_strategy_forward.1} parent=1 // pred_check_branch
      %27 = sbr.rel (0) target = $region9
    $region8: #{vault_strategy_forward.1} parent=1 // pred_region
      %s29 = ssub.s32 896, 896
      %30 = vsyncadd [#allocation5], %s29
      %s31 = sshll.u32 [#allocation4], 4
      %s32 = int_to_ptr.vmem [resolvable:$true] %s31
      %37 = dma.hbm_to_vmem [thread:$0]  %s1, 896, %s32, [#allocation5], 128, 128, 8
    $region9: #{vault_strategy_forward.1} parent=1 // pred_fallthru
      _
    // Predicated region
    $region10: #{vault_strategy_forward.1} parent=1 // pred_check
      _
    $region11: #{vault_strategy_forward.1} parent=1 // pred_check_branch
      %39 = sbr.rel (0) target = $region13
    $region12: #{vault_strategy_forward.1} parent=1 // pred_region
      _
    $region13: #{vault_strategy_forward.1} parent=1 // pred_fallthru
      _
    // Predicated region
    $region14: #{vault_strategy_forward.1} parent=1 // pred_check
      _
    $region15: #{vault_strategy_forward.1} parent=1 // pred_check_branch
      %41 = sbr.rel (0) target = $region17
    $region16: #{vault_strategy_forward.1} parent=1 // pred_region
      %s43 = ssub.s32 2048, 2048
      %44 = vsyncadd [#allocation5], %s43
      %s45 = sshll.u32 [#allocation6], 4
      %s46 = int_to_ptr.vmem [resolvable:$true] %s45
      %51 = dma.hbm_to_vmem [thread:$0]  %s3, 2048, %s46, [#allocation5], 64, 64, 4
    $region17: #{vault_strategy_forward.1} parent=1 // pred_fallthru
      _
    // Predicated region
    $region18: #{vault_strategy_forward.1} parent=1 // pred_check
      _
    $region19: #{vault_strategy_forward.1} parent=1 // pred_check_branch
      %53 = sbr.rel (0) target = $region21
    $region20: #{vault_strategy_forward.1} parent=1 // pred_region
      %s55 = ssub.s32 2048, 2048
      %56 = vsyncadd [#allocation8], %s55
      %s57 = sshll.u32 [#allocation7], 4
      %s58 = int_to_ptr.vmem [resolvable:$true] %s57
      %63 = dma.hbm_to_vmem [thread:$0]  %s4, 2048, %s58, [#allocation8], 128, 128, 8
    $region21: #{vault_strategy_forward.1} parent=1 // pred_fallthru
      _
    // Predicated region
    $region22: #{vault_strategy_forward.1} parent=1 // pred_check
      _
    $region23: #{vault_strategy_forward.1} parent=1 // pred_check_branch
      %65 = sbr.rel (0) target = $region25
    $region24: #{vault_strategy_forward.1} parent=1 // pred_region
      _
    $region25: #{vault_strategy_forward.1} parent=1 // pred_fallthru
      _
    // Predicated region
    $region26: #{vault_strategy_forward.1} parent=1 // pred_check
      _
    $region27: #{vault_strategy_forward.1} parent=1 // pred_check_branch
      %67 = sbr.rel (0) target = $region29
    $region28: #{vault_strategy_forward.1} parent=1 // pred_region
      %s69 = ssub.s32 2048, 2048
      %70 = vsyncadd [#allocation8], %s69
      %s71 = sshll.u32 [#allocation9], 4
      %s72 = int_to_ptr.vmem [resolvable:$true] %s71
      %77 = dma.hbm_to_vmem [thread:$0]  %s6, 2048, %s72, [#allocation8], 64, 64, 4
    $region29: #{vault_strategy_forward.1} parent=1 // pred_fallthru
      _
    // Predicated region
    $region30: #{vault_strategy_forward.1} parent=1 // pred_check
      _
    $region31: #{vault_strategy_forward.1} parent=1 // pred_check_branch
      %79 = sbr.rel (0) target = $region33
    $region32: #{vault_strategy_forward.1} parent=1 // pred_region
      _
    $region33: #{vault_strategy_forward.1} parent=1 // pred_fallthru
      _
    // Predicated region
    $region34: #{vault_strategy_forward.1} parent=1 // pred_check
      _
    $region35: #{vault_strategy_forward.1} parent=1 // pred_check_branch
      %81 = sbr.rel (0) target = $region37
    $region36: #{vault_strategy_forward.1} parent=1 // pred_region
      %82 = dma.done [#allocation3], 128
    $region37: #{vault_strategy_forward.1} parent=1 // pred_fallthru
      _
    // Predicated region
    $region38: #{vault_strategy_forward.1} parent=1 // pred_check
      _
    $region39: #{vault_strategy_forward.1} parent=1 // pred_check_branch
      %84 = sbr.rel (0) target = $region41
    $region40: #{vault_strategy_forward.1} parent=1 // pred_region
      %85 = dma.done [#allocation5], 896
    $region41: #{vault_strategy_forward.1} parent=1 // pred_fallthru
      _
    // Predicated region
    $region42: #{vault_strategy_forward.1} parent=1 // pred_check
      _
    $region43: #{vault_strategy_forward.1} parent=1 // pred_check_branch
      %87 = sbr.rel (0) target = $region45
    $region44: #{vault_strategy_forward.1} parent=1 // pred_region
      %88 = dma.done [#allocation5], 2048
    $region45: #{vault_strategy_forward.1} parent=1 // pred_fallthru
      _
    // Predicated region
    $region46: #{vault_strategy_forward.1} parent=1 // pred_check
      _
    $region47: #{vault_strategy_forward.1} parent=1 // pred_check_branch
      %90 = sbr.rel (0) target = $region49
    $region48: #{vault_strategy_forward.1} parent=1 // pred_region
      %91 = dma.done [#allocation8], 2048
    $region49: #{vault_strategy_forward.1} parent=1 // pred_fallthru
      _
    // Predicated region
    $region50: #{vault_strategy_forward.1} parent=1 // pred_check
      _
    $region51: #{vault_strategy_forward.1} parent=1 // pred_check_branch
      %93 = sbr.rel (0) target = $region53
    $region52: #{vault_strategy_forward.1} parent=1 // pred_region
      %94 = dma.done [#allocation8], 2048
    $region53: #{vault_strategy_forward.1} parent=1 // pred_fallthru
      _
    %v96 = vld [vmem:[#allocation2] sm:$0xff]
    %v97 = vld [vmem:[#allocation4] sm:$0xff]
    %v98 = vld [vmem:[#allocation4 + $0x8] sm:$0xff]
    %v99 = vld [vmem:[#allocation4 + $0x10] sm:$0xff]
    %v100 = vld [vmem:[#allocation4 + $0x18] sm:$0xff]
    %v101 = vld [vmem:[#allocation4 + $0x20] sm:$0xff]
    %v102 = vld [vmem:[#allocation4 + $0x28] sm:$0xff]
    %v103 = vld [vmem:[#allocation4 + $0x30] sm:$0x3]
    %v104 = vld [vmem:[%s2] sm:$0x1]
    %v106 = vlaneseq
    %v107 = vshrl.u32 %v106, 7
    %v108 = vsub.s32 0, %v107
    %v109 = vrot.slane %v104, %v108
    %vm111 = vcmask 408576
    %v113 = vsel %vm111, %v96, 0
    %vm115 = vcmask 1041408
    %v117 = vsel %vm115, %v103, 0
    %119 = vmatprep.subr.mxu0 0.0
    %120 = vmatpush1.msra.mxu0 %v97
    %121 = vmatprep.subr.mxu0 0.0
    %122 = vmatpush1.msra.mxu0 %v98
    %123 = vmatprep.subr.mxu0 0.0
    %124 = vmatpush1.msra.mxu0 %v99
    %125 = vmatprep.subr.mxu0 0.0
    %126 = vmatpush1.msra.mxu0 %v100
    %127 = vmatprep.subr.mxu0 0.0
    %128 = vmatpush1.msra.mxu0 %v101
    %129 = vmatprep.subr.mxu0 0.0
    %130 = vmatpush1.msra.mxu0 %v102
    %131 = vmatprep.subr.mxu0 0.0
    %132 = vmatpush1.msra.mxu0 %v117
    %133 = vmatprep.subr.mxu0 0.0
    %134 = vmatpush1.msra.mxu0 0.0
    %135 = vmatprep.subr.mxu0 0.0
    %136 = vmatpush1.msra.mxu0 0.0
    %137 = vmatprep.subr.mxu0 0.0
    %138 = vmatpush1.msra.mxu0 0.0
    %139 = vmatprep.subr.mxu0 0.0
    %140 = vmatpush1.msra.mxu0 0.0
    %141 = vmatprep.subr.mxu0 0.0
    %142 = vmatpush1.msra.mxu0 0.0
    %143 = vmatprep.subr.mxu0 0.0
    %144 = vmatpush1.msra.mxu0 0.0
    %145 = vmatprep.subr.mxu0 0.0
    %146 = vmatpush1.msra.mxu0 0.0
    %147 = vmatprep.subr.mxu0 0.0
    %148 = vmatpush1.msra.mxu0 0.0
    %149 = vmatprep.subr.mxu0 0.0
    %150 = vmatpush1.msra.mxu0 0.0
    %151 = vmatprep.subr.mxu0 0.0
    %152 = vmatpush1.msra.mxu0 0.0
    %153 = vmatprep.subr.mxu0 0.0
    %154 = vmatpush1.msra.mxu0 0.0
    %155 = vmatprep.subr.mxu0 0.0
    %156 = vmatpush1.msra.mxu0 0.0
    %157 = vmatprep.subr.mxu0 0.0
    %158 = vmatpush1.msra.mxu0 0.0
    %159 = vmatprep.subr.mxu0 0.0
    %160 = vmatpush1.msra.mxu0 0.0
    %161 = vmatprep.subr.mxu0 0.0
    %162 = vmatpush1.msra.mxu0 0.0
    %163 = vmatprep.subr.mxu0 0.0
    %164 = vmatpush1.msra.mxu0 0.0
    %165 = vmatprep.subr.mxu0 0.0
    %166 = vmatpush1.msra.mxu0 0.0
    %167 = vmatprep.subr.mxu0 0.0
    %168 = vmatpush1.msra.mxu0 0.0
    %169 = vmatprep.subr.mxu0 0.0
    %170 = vmatpush1.msra.mxu0 0.0
    %171 = vmatprep.subr.mxu0 0.0
    %172 = vmatpush1.msra.mxu0 0.0
    %173 = vmatprep.subr.mxu0 0.0
    %174 = vmatpush1.msra.mxu0 0.0
    %175 = vmatprep.subr.mxu0 0.0
    %176 = vmatpush1.msra.mxu0 0.0
    %177 = vmatprep.subr.mxu0 0.0
    %178 = vmatpush1.msra.mxu0 0.0
    %179 = vmatprep.subr.mxu0 0.0
    %180 = vmatpush1.msra.mxu0 0.0
    %181 = vmatprep.subr.mxu0 0.0
    %182 = vmatpush1.msra.mxu0 0.0
    %183 = vmatprep.mubr.f32.mxu0 0.0
    %184 = vmatmul.mubr.f32.gmra.mrb[0].mxu0 %v113
    %v185 = vpop.f32.mrb[0].mxu0
    %v186 = vadd.f32 %v109, %v185
    %v187 = vpop.f32.mrb[0].mxu0
    %188 = vdwg.mxu0
    %v189 = vmax.f32 %v186, 0.0
    %v190 = vpack.c.bf16 %v189, %v189
    %v191 = vld [vmem:[#allocation6] sm:$0xf]
    %v192 = vld [vmem:[#allocation6 + $0x4] sm:$0xf]
    %v193 = vld [vmem:[#allocation6 + $0x8] sm:$0xf]
    %v194 = vld [vmem:[#allocation6 + $0xc] sm:$0xf]
    %v195 = vld [vmem:[#allocation6 + $0x10] sm:$0xf]
    %v196 = vld [vmem:[#allocation6 + $0x14] sm:$0xf]
    %v197 = vld [vmem:[#allocation6 + $0x18] sm:$0xf]
    %v198 = vld [vmem:[#allocation6 + $0x1c] sm:$0xf]
    %v199 = vld [vmem:[#allocation6 + $0x20] sm:$0xf]
    %v200 = vld [vmem:[#allocation6 + $0x24] sm:$0xf]
    %v201 = vld [vmem:[#allocation6 + $0x28] sm:$0xf]
    %v202 = vld [vmem:[#allocation6 + $0x2c] sm:$0xf]
    %v203 = vld [vmem:[#allocation6 + $0x30] sm:$0xf]
    %v204 = vld [vmem:[#allocation6 + $0x34] sm:$0xf]
    %v205 = vld [vmem:[#allocation6 + $0x38] sm:$0xf]
    %v206 = vld [vmem:[#allocation6 + $0x3c] sm:$0xf]
    %s207 = scalar_lea.vmem %s2, 1
    %v208 = vld [vmem:[%s207] sm:$0x1]
    %v210 = vlaneseq
    %v211 = vshrl.u32 %v210, 7
    %v212 = vsub.s32 0, %v211
    %v213 = vrot.slane %v208, %v212
    %v231 = vunpack.c.l.b16 %v191
    %v232 = vunpack.c.l.b16 %v192
    %v233 = vunpack.c.l.b16 %v193
    %v234 = vunpack.c.l.b16 %v194
    %v235 = vunpack.c.l.b16 %v195
    %v236 = vunpack.c.l.b16 %v196
    %v237 = vunpack.c.l.b16 %v197
    %v238 = vunpack.c.l.b16 %v198
    %v239 = vunpack.c.l.b16 %v199
    %v240 = vunpack.c.l.b16 %v200
    %v241 = vunpack.c.l.b16 %v201
    %v242 = vunpack.c.l.b16 %v202
    %v243 = vunpack.c.l.b16 %v203
    %v244 = vunpack.c.l.b16 %v204
    %v245 = vunpack.c.l.b16 %v205
    %v246 = vunpack.c.l.b16 %v206
    %v247 = vpack.c.b16 %v232, %v231
    %v248 = vpack.c.b16 %v234, %v233
    %v249 = vpack.c.b16 %v236, %v235
    %v250 = vpack.c.b16 %v238, %v237
    %v251 = vpack.c.b16 %v240, %v239
    %v252 = vpack.c.b16 %v242, %v241
    %v253 = vpack.c.b16 %v244, %v243
    %v254 = vpack.c.b16 %v246, %v245
    %263 = vmatprep.subr.bf16.mxu0 0
    %264 = vmatpush1.bf16.msra.mxu0 %v247
    %265 = vmatprep.subr.bf16.mxu0 0
    %266 = vmatpush1.bf16.msra.mxu0 %v248
    %267 = vmatprep.subr.bf16.mxu0 0
    %268 = vmatpush1.bf16.msra.mxu0 %v249
    %269 = vmatprep.subr.bf16.mxu0 0
    %270 = vmatpush1.bf16.msra.mxu0 %v250
    %271 = vmatprep.subr.bf16.mxu0 0
    %272 = vmatpush1.bf16.msra.mxu0 %v251
    %273 = vmatprep.subr.bf16.mxu0 0
    %274 = vmatpush1.bf16.msra.mxu0 %v252
    %275 = vmatprep.subr.bf16.mxu0 0
    %276 = vmatpush1.bf16.msra.mxu0 %v253
    %277 = vmatprep.subr.bf16.mxu0 0
    %278 = vmatpush1.bf16.msra.mxu0 %v254
    %279 = vmatprep.subr.bf16.mxu0 0
    %280 = vmatpush1.bf16.msra.mxu0 0
    %281 = vmatprep.subr.bf16.mxu0 0
    %282 = vmatpush1.bf16.msra.mxu0 0
    %283 = vmatprep.subr.bf16.mxu0 0
    %284 = vmatpush1.bf16.msra.mxu0 0
    %285 = vmatprep.subr.bf16.mxu0 0
    %286 = vmatpush1.bf16.msra.mxu0 0
    %287 = vmatprep.subr.bf16.mxu0 0
    %288 = vmatpush1.bf16.msra.mxu0 0
    %289 = vmatprep.subr.bf16.mxu0 0
    %290 = vmatpush1.bf16.msra.mxu0 0
    %291 = vmatprep.subr.bf16.mxu0 0
    %292 = vmatpush1.bf16.msra.mxu0 0
    %293 = vmatprep.subr.bf16.mxu0 0
    %294 = vmatpush1.bf16.msra.mxu0 0
    %295 = vmatprep.mubr.bf16.mxu0 0
    %296 = vmatmul.mubr.bf16.gmra.mrb[0].mxu0 %v190
    %v297 = vpop.f32.mrb[0].mxu0
    %v298 = vadd.f32 %v213, %v297
    %v299 = vpop.f32.mrb[0].mxu0
    %v300 = vpop.f32.mrb[0].mxu0
    %v301 = vpop.f32.mrb[0].mxu0
    %302 = vdwg.mxu0
    %v303 = vmax.f32 %v298, 0.0
    %v304 = vpack.c.bf16 %v303, %v303
    %s305 = scalar_lea.vmem [#allocation6], 64
    %v306 = vld [vmem:[%s305] sm:$0xf]
    %v307 = vld [vmem:[%s305 + $0x4] sm:$0xf]
    %v308 = vld [vmem:[%s305 + $0x8] sm:$0xf]
    %v309 = vld [vmem:[%s305 + $0xc] sm:$0xf]
    %v310 = vld [vmem:[%s305 + $0x10] sm:$0xf]
    %v311 = vld [vmem:[%s305 + $0x14] sm:$0xf]
    %v312 = vld [vmem:[%s305 + $0x18] sm:$0xf]
    %v313 = vld [vmem:[%s305 + $0x1c] sm:$0xf]
    %v314 = vld [vmem:[%s305 + $0x20] sm:$0xf]
    %v315 = vld [vmem:[%s305 + $0x24] sm:$0xf]
    %v316 = vld [vmem:[%s305 + $0x28] sm:$0xf]
    %v317 = vld [vmem:[%s305 + $0x2c] sm:$0xf]
    %v318 = vld [vmem:[%s305 + $0x30] sm:$0xf]
    %v319 = vld [vmem:[%s305 + $0x34] sm:$0xf]
    %v320 = vld [vmem:[%s305 + $0x38] sm:$0xf]
    %v321 = vld [vmem:[%s305 + $0x3c] sm:$0xf]
    %s322 = scalar_lea.vmem %s2, 2
    %v323 = vld [vmem:[%s322] sm:$0x1]
    %v325 = vlaneseq
    %v326 = vshrl.u32 %v325, 7
    %v327 = vsub.s32 0, %v326
    %v328 = vrot.slane %v323, %v327
    %v346 = vunpack.c.l.b16 %v306
    %v347 = vunpack.c.l.b16 %v307
    %v348 = vunpack.c.l.b16 %v308
    %v349 = vunpack.c.l.b16 %v309
    %v350 = vunpack.c.l.b16 %v310
    %v351 = vunpack.c.l.b16 %v311
    %v352 = vunpack.c.l.b16 %v312
    %v353 = vunpack.c.l.b16 %v313
    %v354 = vunpack.c.l.b16 %v314
    %v355 = vunpack.c.l.b16 %v315
    %v356 = vunpack.c.l.b16 %v316
    %v357 = vunpack.c.l.b16 %v317
    %v358 = vunpack.c.l.b16 %v318
    %v359 = vunpack.c.l.b16 %v319
    %v360 = vunpack.c.l.b16 %v320
    %v361 = vunpack.c.l.b16 %v321
    %v362 = vpack.c.b16 %v347, %v346
    %v363 = vpack.c.b16 %v349, %v348
    %v364 = vpack.c.b16 %v351, %v350
    %v365 = vpack.c.b16 %v353, %v352
    %v366 = vpack.c.b16 %v355, %v354
    %v367 = vpack.c.b16 %v357, %v356
    %v368 = vpack.c.b16 %v359, %v358
    %v369 = vpack.c.b16 %v361, %v360
    %378 = vmatprep.subr.bf16.mxu0 0
    %379 = vmatpush1.bf16.msra.mxu0 %v362
    %380 = vmatprep.subr.bf16.mxu0 0
    %381 = vmatpush1.bf16.msra.mxu0 %v363
    %382 = vmatprep.subr.bf16.mxu0 0
    %383 = vmatpush1.bf16.msra.mxu0 %v364
    %384 = vmatprep.subr.bf16.mxu0 0
    %385 = vmatpush1.bf16.msra.mxu0 %v365
    %386 = vmatprep.subr.bf16.mxu0 0
    %387 = vmatpush1.bf16.msra.mxu0 %v366
    %388 = vmatprep.subr.bf16.mxu0 0
    %389 = vmatpush1.bf16.msra.mxu0 %v367
    %390 = vmatprep.subr.bf16.mxu0 0
    %391 = vmatpush1.bf16.msra.mxu0 %v368
    %392 = vmatprep.subr.bf16.mxu0 0
    %393 = vmatpush1.bf16.msra.mxu0 %v369
    %394 = vmatprep.subr.bf16.mxu0 0
    %395 = vmatpush1.bf16.msra.mxu0 0
    %396 = vmatprep.subr.bf16.mxu0 0
    %397 = vmatpush1.bf16.msra.mxu0 0
    %398 = vmatprep.subr.bf16.mxu0 0
    %399 = vmatpush1.bf16.msra.mxu0 0
    %400 = vmatprep.subr.bf16.mxu0 0
    %401 = vmatpush1.bf16.msra.mxu0 0
    %402 = vmatprep.subr.bf16.mxu0 0
    %403 = vmatpush1.bf16.msra.mxu0 0
    %404 = vmatprep.subr.bf16.mxu0 0
    %405 = vmatpush1.bf16.msra.mxu0 0
    %406 = vmatprep.subr.bf16.mxu0 0
    %407 = vmatpush1.bf16.msra.mxu0 0
    %408 = vmatprep.subr.bf16.mxu0 0
    %409 = vmatpush1.bf16.msra.mxu0 0
    %410 = vmatprep.mubr.bf16.mxu0 0
    %411 = vmatmul.mubr.bf16.gmra.mrb[0].mxu0 %v304
    %v412 = vpop.f32.mrb[0].mxu0
    %v413 = vadd.f32 %v328, %v412
    %v414 = vpop.f32.mrb[0].mxu0
    %v415 = vpop.f32.mrb[0].mxu0
    %v416 = vpop.f32.mrb[0].mxu0
    %417 = vdwg.mxu0
    %v418 = vmax.f32 %v413, 0.0
    %v419 = vpack.c.bf16 %v418, %v418
    %v420 = vld [vmem:[#allocation7] sm:$0xff]
    %v421 = vld [vmem:[#allocation7 + $0x8] sm:$0xff]
    %v422 = vld [vmem:[#allocation7 + $0x10] sm:$0xff]
    %v423 = vld [vmem:[#allocation7 + $0x18] sm:$0xff]
    %v424 = vld [vmem:[#allocation7 + $0x20] sm:$0xff]
    %v425 = vld [vmem:[#allocation7 + $0x28] sm:$0xff]
    %v426 = vld [vmem:[#allocation7 + $0x30] sm:$0xff]
    %v427 = vld [vmem:[#allocation7 + $0x38] sm:$0xff]
    %v428 = vld [vmem:[#allocation7 + $0x40] sm:$0xff]
    %v429 = vld [vmem:[#allocation7 + $0x48] sm:$0xff]
    %v430 = vld [vmem:[#allocation7 + $0x50] sm:$0xff]
    %v431 = vld [vmem:[#allocation7 + $0x58] sm:$0xff]
    %v432 = vld [vmem:[#allocation7 + $0x60] sm:$0xff]
    %v433 = vld [vmem:[#allocation7 + $0x68] sm:$0xff]
    %v434 = vld [vmem:[#allocation7 + $0x70] sm:$0xff]
    %v435 = vld [vmem:[#allocation7 + $0x78] sm:$0xff]
    %v436 = vld [vmem:[%s5] sm:$0x3]
    %v438 = vlaneseq
    %v439 = vshrl.u32 %v438, 7
    %v440 = vsub.s32 0, %v439
    %v441 = vrot.slane %v436, %v440
    %v442 = vlaneseq
    %v443 = vshrl.u32 %v442, 7
    %v444 = vsub.s32 1, %v443
    %v445 = vrot.slane %v436, %v444
    %v464 = vunpack.c.l.b16 %v420
    %v465 = vunpack.c.h.b16 %v420
    %v466 = vunpack.c.l.b16 %v421
    %v467 = vunpack.c.h.b16 %v421
    %v468 = vunpack.c.l.b16 %v422
    %v469 = vunpack.c.h.b16 %v422
    %v470 = vunpack.c.l.b16 %v423
    %v471 = vunpack.c.h.b16 %v423
    %v472 = vunpack.c.l.b16 %v424
    %v473 = vunpack.c.h.b16 %v424
    %v474 = vunpack.c.l.b16 %v425
    %v475 = vunpack.c.h.b16 %v425
    %v476 = vunpack.c.l.b16 %v426
    %v477 = vunpack.c.h.b16 %v426
    %v478 = vunpack.c.l.b16 %v427
    %v479 = vunpack.c.h.b16 %v427
    %v480 = vunpack.c.l.b16 %v428
    %v481 = vunpack.c.h.b16 %v428
    %v482 = vunpack.c.l.b16 %v429
    %v483 = vunpack.c.h.b16 %v429
    %v484 = vunpack.c.l.b16 %v430
    %v485 = vunpack.c.h.b16 %v430
    %v486 = vunpack.c.l.b16 %v431
    %v487 = vunpack.c.h.b16 %v431
    %v488 = vunpack.c.l.b16 %v432
    %v489 = vunpack.c.h.b16 %v432
    %v490 = vunpack.c.l.b16 %v433
    %v491 = vunpack.c.h.b16 %v433
    %v492 = vunpack.c.l.b16 %v434
    %v493 = vunpack.c.h.b16 %v434
    %v494 = vunpack.c.l.b16 %v435
    %v495 = vunpack.c.h.b16 %v435
    %v496 = vpack.c.b16 %v466, %v464
    %v497 = vpack.c.b16 %v467, %v465
    %v498 = vpack.c.b16 %v470, %v468
    %v499 = vpack.c.b16 %v471, %v469
    %v500 = vpack.c.b16 %v474, %v472
    %v501 = vpack.c.b16 %v475, %v473
    %v502 = vpack.c.b16 %v478, %v476
    %v503 = vpack.c.b16 %v479, %v477
    %v504 = vpack.c.b16 %v482, %v480
    %v505 = vpack.c.b16 %v483, %v481
    %v506 = vpack.c.b16 %v486, %v484
    %v507 = vpack.c.b16 %v487, %v485
    %v508 = vpack.c.b16 %v490, %v488
    %v509 = vpack.c.b16 %v491, %v489
    %v510 = vpack.c.b16 %v494, %v492
    %v511 = vpack.c.b16 %v495, %v493
    %528 = vmatprep.subr.bf16.mxu0 %v497
    %529 = vmatpush1.bf16.msra.mxu0 %v496
    %530 = vmatprep.subr.bf16.mxu0 %v499
    %531 = vmatpush1.bf16.msra.mxu0 %v498
    %532 = vmatprep.subr.bf16.mxu0 %v501
    %533 = vmatpush1.bf16.msra.mxu0 %v500
    %534 = vmatprep.subr.bf16.mxu0 %v503
    %535 = vmatpush1.bf16.msra.mxu0 %v502
    %536 = vmatprep.subr.bf16.mxu0 %v505
    %537 = vmatpush1.bf16.msra.mxu0 %v504
    %538 = vmatprep.subr.bf16.mxu0 %v507
    %539 = vmatpush1.bf16.msra.mxu0 %v506
    %540 = vmatprep.subr.bf16.mxu0 %v509
    %541 = vmatpush1.bf16.msra.mxu0 %v508
    %542 = vmatprep.subr.bf16.mxu0 %v511
    %543 = vmatpush1.bf16.msra.mxu0 %v510
    %544 = vmatprep.subr.bf16.mxu0 0
    %545 = vmatpush1.bf16.msra.mxu0 0
    %546 = vmatprep.subr.bf16.mxu0 0
    %547 = vmatpush1.bf16.msra.mxu0 0
    %548 = vmatprep.subr.bf16.mxu0 0
    %549 = vmatpush1.bf16.msra.mxu0 0
    %550 = vmatprep.subr.bf16.mxu0 0
    %551 = vmatpush1.bf16.msra.mxu0 0
    %552 = vmatprep.subr.bf16.mxu0 0
    %553 = vmatpush1.bf16.msra.mxu0 0
    %554 = vmatprep.subr.bf16.mxu0 0
    %555 = vmatpush1.bf16.msra.mxu0 0
    %556 = vmatprep.subr.bf16.mxu0 0
    %557 = vmatpush1.bf16.msra.mxu0 0
    %558 = vmatprep.subr.bf16.mxu0 0
    %559 = vmatpush1.bf16.msra.mxu0 0
    %560 = vmatprep.mubr.bf16.mxu0 0
    %561 = vmatmul.mubr.bf16.gmra.mrb[0].mxu0 %v419
    %v562 = vpop.f32.mrb[0].mxu0
    %v563 = vadd.f32 %v441, %v562
    %v564 = vpop.f32.mrb[0].mxu0
    %v565 = vadd.f32 %v445, %v564
    %v566 = vpop.f32.mrb[0].mxu0
    %v567 = vpop.f32.mrb[0].mxu0
    %568 = vdwg.mxu0
    %v569 = vmax.f32 %v563, 0.0
    %v570 = vmax.f32 %v565, 0.0
    %v571 = vpack.c.bf16 %v569, %v569
    %v572 = vpack.c.bf16 %v570, %v570
    %v573 = vld [vmem:[#allocation9] sm:$0xf]
    %v574 = vld [vmem:[#allocation9 + $0x4] sm:$0xf]
    %v575 = vld [vmem:[#allocation9 + $0x8] sm:$0xf]
    %v576 = vld [vmem:[#allocation9 + $0xc] sm:$0xf]
    %v577 = vld [vmem:[#allocation9 + $0x10] sm:$0xf]
    %v578 = vld [vmem:[#allocation9 + $0x14] sm:$0xf]
    %v579 = vld [vmem:[#allocation9 + $0x18] sm:$0xf]
    %v580 = vld [vmem:[#allocation9 + $0x1c] sm:$0xf]
    %v581 = vld [vmem:[#allocation9 + $0x20] sm:$0xf]
    %v582 = vld [vmem:[#allocation9 + $0x24] sm:$0xf]
    %v583 = vld [vmem:[#allocation9 + $0x28] sm:$0xf]
    %v584 = vld [vmem:[#allocation9 + $0x2c] sm:$0xf]
    %v585 = vld [vmem:[#allocation9 + $0x30] sm:$0xf]
    %v586 = vld [vmem:[#allocation9 + $0x34] sm:$0xf]
    %v587 = vld [vmem:[#allocation9 + $0x38] sm:$0xf]
    %v588 = vld [vmem:[#allocation9 + $0x3c] sm:$0xf]
    %v589 = vld [vmem:[#allocation9 + $0x40] sm:$0xf]
    %v590 = vld [vmem:[#allocation9 + $0x44] sm:$0xf]
    %v591 = vld [vmem:[#allocation9 + $0x48] sm:$0xf]
    %v592 = vld [vmem:[#allocation9 + $0x4c] sm:$0xf]
    %v593 = vld [vmem:[#allocation9 + $0x50] sm:$0xf]
    %v594 = vld [vmem:[#allocation9 + $0x54] sm:$0xf]
    %v595 = vld [vmem:[#allocation9 + $0x58] sm:$0xf]
    %v596 = vld [vmem:[#allocation9 + $0x5c] sm:$0xf]
    %v597 = vld [vmem:[#allocation9 + $0x60] sm:$0xf]
    %v598 = vld [vmem:[#allocation9 + $0x64] sm:$0xf]
    %v599 = vld [vmem:[#allocation9 + $0x68] sm:$0xf]
    %v600 = vld [vmem:[#allocation9 + $0x6c] sm:$0xf]
    %v601 = vld [vmem:[#allocation9 + $0x70] sm:$0xf]
    %v602 = vld [vmem:[#allocation9 + $0x74] sm:$0xf]
    %v603 = vld [vmem:[#allocation9 + $0x78] sm:$0xf]
    %v604 = vld [vmem:[#allocation9 + $0x7c] sm:$0xf]
    %v605 = vld [vmem:[%s7] sm:$0x1]
    %v607 = vlaneseq
    %v608 = vshrl.u32 %v607, 7
    %v609 = vsub.s32 0, %v608
    %v610 = vrot.slane %v605, %v609
    %v644 = vunpack.c.l.b16 %v573
    %v645 = vunpack.c.l.b16 %v574
    %v646 = vunpack.c.l.b16 %v575
    %v647 = vunpack.c.l.b16 %v576
    %v648 = vunpack.c.l.b16 %v577
    %v649 = vunpack.c.l.b16 %v578
    %v650 = vunpack.c.l.b16 %v579
    %v651 = vunpack.c.l.b16 %v580
    %v652 = vunpack.c.l.b16 %v581
    %v653 = vunpack.c.l.b16 %v582
    %v654 = vunpack.c.l.b16 %v583
    %v655 = vunpack.c.l.b16 %v584
    %v656 = vunpack.c.l.b16 %v585
    %v657 = vunpack.c.l.b16 %v586
    %v658 = vunpack.c.l.b16 %v587
    %v659 = vunpack.c.l.b16 %v588
    %v660 = vunpack.c.l.b16 %v589
    %v661 = vunpack.c.l.b16 %v590
    %v662 = vunpack.c.l.b16 %v591
    %v663 = vunpack.c.l.b16 %v592
    %v664 = vunpack.c.l.b16 %v593
    %v665 = vunpack.c.l.b16 %v594
    %v666 = vunpack.c.l.b16 %v595
    %v667 = vunpack.c.l.b16 %v596
    %v668 = vunpack.c.l.b16 %v597
    %v669 = vunpack.c.l.b16 %v598
    %v670 = vunpack.c.l.b16 %v599
    %v671 = vunpack.c.l.b16 %v600
    %v672 = vunpack.c.l.b16 %v601
    %v673 = vunpack.c.l.b16 %v602
    %v674 = vunpack.c.l.b16 %v603
    %v675 = vunpack.c.l.b16 %v604
    %v676 = vpack.c.b16 %v645, %v644
    %v677 = vpack.c.b16 %v647, %v646
    %v678 = vpack.c.b16 %v649, %v648
    %v679 = vpack.c.b16 %v651, %v650
    %v680 = vpack.c.b16 %v653, %v652
    %v681 = vpack.c.b16 %v655, %v654
    %v682 = vpack.c.b16 %v657, %v656
    %v683 = vpack.c.b16 %v659, %v658
    %v684 = vpack.c.b16 %v661, %v660
    %v685 = vpack.c.b16 %v663, %v662
    %v686 = vpack.c.b16 %v665, %v664
    %v687 = vpack.c.b16 %v667, %v666
    %v688 = vpack.c.b16 %v669, %v668
    %v689 = vpack.c.b16 %v671, %v670
    %v690 = vpack.c.b16 %v673, %v672
    %v691 = vpack.c.b16 %v675, %v674
    %708 = vmatprep.subr.bf16.mxu0 0
    %709 = vmatpush1.bf16.msra.mxu0 %v676
    %710 = vmatprep.subr.bf16.mxu0 0
    %711 = vmatpush1.bf16.msra.mxu0 %v677
    %712 = vmatprep.subr.bf16.mxu0 0
    %713 = vmatpush1.bf16.msra.mxu0 %v678
    %714 = vmatprep.subr.bf16.mxu0 0
    %715 = vmatpush1.bf16.msra.mxu0 %v679
    %716 = vmatprep.subr.bf16.mxu0 0
    %717 = vmatpush1.bf16.msra.mxu0 %v680
    %718 = vmatprep.subr.bf16.mxu0 0
    %719 = vmatpush1.bf16.msra.mxu0 %v681
    %720 = vmatprep.subr.bf16.mxu0 0
    %721 = vmatpush1.bf16.msra.mxu0 %v682
    %722 = vmatprep.subr.bf16.mxu0 0
    %723 = vmatpush1.bf16.msra.mxu0 %v683
    %724 = vmatprep.subr.bf16.mxu0 0
    %725 = vmatpush1.bf16.msra.mxu0 %v684
    %726 = vmatprep.subr.bf16.mxu0 0
    %727 = vmatpush1.bf16.msra.mxu0 %v685
    %728 = vmatprep.subr.bf16.mxu0 0
    %729 = vmatpush1.bf16.msra.mxu0 %v686
    %730 = vmatprep.subr.bf16.mxu0 0
    %731 = vmatpush1.bf16.msra.mxu0 %v687
    %732 = vmatprep.subr.bf16.mxu0 0
    %733 = vmatpush1.bf16.msra.mxu0 %v688
    %734 = vmatprep.subr.bf16.mxu0 0
    %735 = vmatpush1.bf16.msra.mxu0 %v689
    %736 = vmatprep.subr.bf16.mxu0 0
    %737 = vmatpush1.bf16.msra.mxu0 %v690
    %738 = vmatprep.subr.bf16.mxu0 0
    %739 = vmatpush1.bf16.msra.mxu0 %v691
    %740 = vmatprep.mubr.bf16.mxu0 %v572
    %741 = vmatmul.mubr.bf16.gmra.mrb[0].mxu0 %v571
    %v742 = vpop.f32.mrb[0].mxu0
    %v743 = vadd.f32 %v610, %v742
    %v744 = vpop.f32.mrb[0].mxu0
    %v745 = vpop.f32.mrb[0].mxu0
    %v746 = vpop.f32.mrb[0].mxu0
    %747 = vdwg.mxu0
    %v748 = vlaneseq
    %v749 = vand.u32 %v748, 127
    %vm750 = vcmp.ge.s32.totalorder %v749, 11
    %vm751 = vcmp.lt.s32.totalorder %v749, 21
    %vm752 = vmand %vm750, %vm751
    %vm753 = vcmp.eq.s32.totalorder %v749, 10
    %v754 = vsel %vm752, %v743, -1e+30
    %755 = vmax.xlane.f32.xlu0 %v754
    %v756 = vpop.xlane.xlu0 %755
    %v757 = vsub.f32 %v743, %v756
    %v758 = vsub.f32 0.0, %v743
    %v759 = vsel %vm753, %v758, -1e+30
    %v760 = vsel %vm752, %v757, %v759
    %v761 = vmul.f32 %v760, 1.442695
    %v762 = vpow.pop %v761
    %v763 = vadd.f32 %v762, 1.0
    %v764 = vrcp.pop %v763
    %v765 = vmul.f32 1.0, %v764
    %v766 = vsel %vm752, %v762, 0.0
    %767 = vadd.xlane.f32.xlu0 %v766
    %v768 = vpop.xlane.xlu0 %767
    %v769 = vrcp.pop %v768
    %v770 = vmul.f32 %v766, %v769
    %vm771 = vcmp.lt.s32.totalorder %v749, 10
    %v772 = vsel %vm771, %v743, 0.0
    %v773 = vsel %vm753, %v765, %v772
    %v774 = vsel %vm752, %v770, %v773
    %v775 = vpack.c.bf16 %v774, %v774
    %776 = vst [vmem:[%s8] sm:$0xf] %v775
    // Predicated region
    $region54: #{vault_strategy_forward.1} parent=1 // pred_check
      _
    $region55: #{vault_strategy_forward.1} parent=1 // pred_check_branch
      %778 = sbr.rel (0) target = $region57
    $region56: #{vault_strategy_forward.1} parent=1 // pred_region
      _
    $region57: #{vault_strategy_forward.1} parent=1 // pred_fallthru
      _
    // Predicated region
    $region58: #{vault_strategy_forward.1} parent=1 // pred_check
      _
    $region59: #{vault_strategy_forward.1} parent=1 // pred_check_branch
      %780 = sbr.rel (0) target = $region61
    $region60: #{vault_strategy_forward.1} parent=1 // pred_region
      _
    $region61: #{vault_strategy_forward.1} parent=1 // pred_fallthru
      _
    %781 = vsyncpa [#allocation3], 1
    %782 = vsyncpa [#allocation5], 1
    %783 = vsyncpa [#allocation8], 1

</llo_original>
